<compile_context>
chip_gen: v5e
topology: v5e:2x2
jax: 0.10.0
libtpu: 0.0.40
codegen_flags: <defaults>
</compile_context>

<pallas_src>
import functools

import jax
import jax.numpy as jnp
from jax.experimental import pallas as pl
from jax.experimental.pallas import tpu as pltpu


_MAX_BLOCK_ROWS = 4096   # 4 MiB x-block + 2 MiB out-block per grid step
_MIN_BLOCK_ROWS = 8      # sublane granularity: (R, 128) blocks need R % 8 == 0
_SPLIT_ROWS = 512        # split single-step grids when there is work for 2 dense tiles


def _round_up(a, b):
    return (a + b - 1) // b * b


def _choose_block_rows(rows, max_block_rows=_MAX_BLOCK_ROWS):
    """Pick a sublane-row tile: big (HBM roofline), clamped to the data for small
    batches, and yielding >= 2 grid steps when there is enough work (v7x megacore)."""
    rows = max(rows, _MIN_BLOCK_ROWS)
    n_steps = pl.cdiv(rows, max_block_rows)
    if n_steps < 2 and rows >= 2 * _SPLIT_ROWS:
        n_steps = 2          # enough data for two dense tiles -> use both v7x TCs
    return _round_up(pl.cdiv(rows, n_steps), _MIN_BLOCK_ROWS)


def simple_nn_kernel(params_ref, x_ref, o_ref):
    # params_ref: SMEM f32[9] = [W1(2x2) row-major, b1(2), W2(1x2), b2(1)]
    # x_ref:      VMEM f32[2, R, 128]  (feature-major; batch dense on sublanes+lanes)
    # o_ref:      VMEM f32[R, 128]     (dense output slab)
    x0 = x_ref[0]                      # (R, 128) feature 0 -- ref-level index, free view
    x1 = x_ref[1]                      # (R, 128) feature 1

    w1_00 = params_ref[0]
    w1_01 = params_ref[1]
    w1_10 = params_ref[2]
    w1_11 = params_ref[3]
    b1_0 = params_ref[4]
    b1_1 = params_ref[5]
    w2_0 = params_ref[6]
    w2_1 = params_ref[7]
    b2_0 = params_ref[8]

    # fc1 + ReLU: h_k = relu(W1[k,0]*x0 + W1[k,1]*x1 + b1[k])  -- pure VPU FMAs on
    # full (R, 128) vreg slabs.
    h0 = jnp.maximum(w1_00 * x0 + w1_01 * x1 + b1_0, 0.0)
    h1 = jnp.maximum(w1_10 * x0 + w1_11 * x1 + b1_1, 0.0)

    # fc2: y = W2[0,0]*h0 + W2[0,1]*h1 + b2
    o_ref[...] = (w2_0 * h0 + w2_1 * h1 + b2_0).astype(o_ref.dtype)


def simple_nn_forward_dense(x_dense, params, *, block_rows=None):
    """Fast path: forward pass on the lane/sublane-dense, feature-major layout.

    x_dense: (2, rows, 128) f32 -- x_dense[f, r, l] is feature f of batch element
             128*r + l (zero-padded past the real batch).
    params:  (9,) f32 = [W1 row-major(4), b1(2), W2(2), b2(1)].
    returns: (rows, 128) f32 with y for batch element 128*r + l at [r, l].
    """
    nfeat, rows, lanes = x_dense.shape
    assert nfeat == 2 and lanes == 128 and rows % _MIN_BLOCK_ROWS == 0, x_dense.shape
    if block_rows is None:
        block_rows = _choose_block_rows(rows)
    grid_n = pl.cdiv(rows, block_rows)

    return pl.pallas_call(
        simple_nn_kernel,
        out_shape=jax.ShapeDtypeStruct((rows, 128), jnp.float32),
        grid=(grid_n,),
        in_specs=[
            # 36 bytes of parameters: whole array in SMEM, read as scalars.
            pl.BlockSpec(memory_space=pltpu.MemorySpace.SMEM),
            # Dense (2, R, 128) input tile, double-buffered by the pipeline.
            pl.BlockSpec((2, block_rows, 128), lambda i: (0, i, 0)),
        ],
        # Dense (R, 128) output tile -> unmasked full-vreg stores.
        out_specs=pl.BlockSpec((block_rows, 128), lambda i: (i, 0)),
        compiler_params=pltpu.CompilerParams(
            dimension_semantics=("parallel",),      # batch tiles shard across v7x TCs
            vmem_limit_bytes=32 * 1024 * 1024,      # ~12 MiB used; valid on all gens
        ),
    )(params, x_dense)


@functools.partial(jax.jit, static_argnames=("max_block_rows",))
def simple_nn_forward(x, w1, b1, w2, b2, *, max_block_rows=_MAX_BLOCK_ROWS):
    """Forward pass of SimpleNN from PyTorch-layout inputs.

    x:  (B, 2) f32 (nn.Linear input layout)
    w1: (2, 2) torch layout (out, in); b1: (2,)
    w2: (1, 2) torch layout (out, in); b2: (1,)
    returns: (B, 1) f32
    """
    B = x.shape[0]

    # Flatten all parameters into one tiny SMEM-resident array (9 f32 scalars).
    params = jnp.concatenate(
        [w1.reshape(-1), b1.reshape(-1), w2.reshape(-1), b2.reshape(-1)]
    ).astype(jnp.float32)

    # Tile selection: clamp to the data for small B, split for the v7x megacore,
    # and pad the batch so the grid divides exactly (no ragged edge blocks).
    rows_needed = _round_up(pl.cdiv(B, 128), _MIN_BLOCK_ROWS)
    block_rows = _choose_block_rows(rows_needed, max_block_rows)
    grid_n = pl.cdiv(rows_needed, block_rows)
    rows = grid_n * block_rows
    bp = rows * 128

    # Layout plumbing: one fused pad+transpose pass from (B, 2) to the dense
    # feature-major (2, rows, 128) layout.  A producer that emits this layout
    # directly should call simple_nn_forward_dense() and skip this pass entirely.
    x32 = x.astype(jnp.float32)
    if bp != B:
        x32 = jnp.pad(x32, ((0, bp - B), (0, 0)))
    x_dense = x32.T.reshape(2, rows, 128)

    out = simple_nn_forward_dense(x_dense, params, block_rows=block_rows)

    # Back to PyTorch's (B, 1).
    return out.reshape(bp)[:B].reshape(B, 1).astype(x.dtype)


def reference_forward(x, w1, b1, w2, b2):
    h = jnp.maximum(x @ w1.T + b1, 0.0)
    return h @ w2.T + b2


if __name__ == "__main__":
    key = jax.random.PRNGKey(0)
    kx, k1, k2, k3, k4 = jax.random.split(key, 5)

    # Deterministic parameters matching nn.Linear shapes: weight (out, in), bias (out,)
    w1 = jax.random.normal(k1, (2, 2), dtype=jnp.float32) * 0.5
    b1 = jax.random.normal(k2, (2,), dtype=jnp.float32) * 0.1
    w2 = jax.random.normal(k3, (1, 2), dtype=jnp.float32) * 0.5
    b2 = jax.random.normal(k4, (1,), dtype=jnp.float32) * 0.1

    # Primary small-shape run (module example uses (1, 2); batch=2 exercises broadcast).
    B = 2
    x = jax.random.normal(kx, (B, 2), dtype=jnp.float32)
    out = jax.block_until_ready(simple_nn_forward(x, w1, b1, w2, b2))
    ref = reference_forward(x, w1, b1, w2, b2)
    assert out.shape == (B, 1), out.shape
    assert jnp.allclose(out, ref, atol=1e-5, rtol=1e-5), (out, ref)

    # Secondary check: batch needing padding + a multi-step grid (grid=(3,)) at a
    # small forced tile size, exercising the parallel batch-tiling path.
    B2 = 5000
    x2 = jax.random.normal(kx, (B2, 2), dtype=jnp.float32)
    out2 = jax.block_until_ready(
        simple_nn_forward(x2, w1, b1, w2, b2, max_block_rows=16)
    )
    ref2 = reference_forward(x2, w1, b1, w2, b2)
    assert out2.shape == (B2, 1), out2.shape
    assert jnp.allclose(out2, ref2, atol=1e-5, rtol=1e-5)

    print("KERNEL_OK")
</pallas_src>

<mosaic_0001>
module attributes {stable_mosaic.version = 11 : i64} {
  func.func @simple_nn_kernel(%arg0: i32, %arg1: memref<9xf32, #tpu.memory_space<smem>>, %arg2: memref<2x8x128xf32, #tpu.memory_space<vmem>>, %arg3: memref<8x128xf32, #tpu.memory_space<vmem>>) attributes {dimension_semantics = [#tpu.dimension_semantics<parallel>], iteration_bounds = array<i64: 1>, scalar_prefetch = 0 : i64, scratch_operands = 0 : i64, tpu.core_type = #tpu.core_type<tc>, window_params = [{transform_indices = @transform_0, window_bounds = array<i64: 9>}, {transform_indices = @transform_1, window_bounds = array<i64: 2, 8, 128>}, {transform_indices = @transform_2, window_bounds = array<i64: 8, 128>}]} {
    %c0 = arith.constant 0 : index
    %c0_0 = arith.constant 0 : index
    %c0_1 = arith.constant 0 : index
    %0 = vector.load %arg2[%c0, %c0_0, %c0_1] : memref<2x8x128xf32, #tpu.memory_space<vmem>>, vector<1x8x128xf32>
    %1 = vector.shape_cast %0 : vector<1x8x128xf32> to vector<8x128xf32>
    %c1 = arith.constant 1 : index
    %c0_2 = arith.constant 0 : index
    %c0_3 = arith.constant 0 : index
    %2 = vector.load %arg2[%c1, %c0_2, %c0_3] : memref<2x8x128xf32, #tpu.memory_space<vmem>>, vector<1x8x128xf32>
    %3 = vector.shape_cast %2 : vector<1x8x128xf32> to vector<8x128xf32>
    %c0_4 = arith.constant 0 : index
    %4 = memref.load %arg1[%c0_4] : memref<9xf32, #tpu.memory_space<smem>>
    %c1_5 = arith.constant 1 : index
    %5 = memref.load %arg1[%c1_5] : memref<9xf32, #tpu.memory_space<smem>>
    %c2 = arith.constant 2 : index
    %6 = memref.load %arg1[%c2] : memref<9xf32, #tpu.memory_space<smem>>
    %c3 = arith.constant 3 : index
    %7 = memref.load %arg1[%c3] : memref<9xf32, #tpu.memory_space<smem>>
    %c4 = arith.constant 4 : index
    %8 = memref.load %arg1[%c4] : memref<9xf32, #tpu.memory_space<smem>>
    %c5 = arith.constant 5 : index
    %9 = memref.load %arg1[%c5] : memref<9xf32, #tpu.memory_space<smem>>
    %c6 = arith.constant 6 : index
    %10 = memref.load %arg1[%c6] : memref<9xf32, #tpu.memory_space<smem>>
    %c7 = arith.constant 7 : index
    %11 = memref.load %arg1[%c7] : memref<9xf32, #tpu.memory_space<smem>>
    %c8 = arith.constant 8 : index
    %12 = memref.load %arg1[%c8] : memref<9xf32, #tpu.memory_space<smem>>
    %13 = vector.broadcast %4 : f32 to vector<8x128xf32>
    %14 = arith.mulf %13, %1 : vector<8x128xf32>
    %15 = vector.broadcast %5 : f32 to vector<8x128xf32>
    %16 = arith.mulf %15, %3 : vector<8x128xf32>
    %17 = arith.addf %14, %16 : vector<8x128xf32>
    %18 = vector.broadcast %8 : f32 to vector<8x128xf32>
    %19 = arith.addf %17, %18 : vector<8x128xf32>
    %cst = arith.constant 0.000000e+00 : f32
    %20 = vector.broadcast %cst : f32 to vector<8x128xf32>
    %21 = arith.maximumf %19, %20 : vector<8x128xf32>
    %22 = vector.broadcast %6 : f32 to vector<8x128xf32>
    %23 = arith.mulf %22, %1 : vector<8x128xf32>
    %24 = vector.broadcast %7 : f32 to vector<8x128xf32>
    %25 = arith.mulf %24, %3 : vector<8x128xf32>
    %26 = arith.addf %23, %25 : vector<8x128xf32>
    %27 = vector.broadcast %9 : f32 to vector<8x128xf32>
    %28 = arith.addf %26, %27 : vector<8x128xf32>
    %cst_6 = arith.constant 0.000000e+00 : f32
    %29 = vector.broadcast %cst_6 : f32 to vector<8x128xf32>
    %30 = arith.maximumf %28, %29 : vector<8x128xf32>
    %31 = vector.broadcast %10 : f32 to vector<8x128xf32>
    %32 = arith.mulf %31, %21 : vector<8x128xf32>
    %33 = vector.broadcast %11 : f32 to vector<8x128xf32>
    %34 = arith.mulf %33, %30 : vector<8x128xf32>
    %35 = arith.addf %32, %34 : vector<8x128xf32>
    %36 = vector.broadcast %12 : f32 to vector<8x128xf32>
    %37 = arith.addf %35, %36 : vector<8x128xf32>
    %c0_7 = arith.constant 0 : index
    %c0_8 = arith.constant 0 : index
    %38 = vector.load %arg3[%c0_7, %c0_8] : memref<8x128xf32, #tpu.memory_space<vmem>>, vector<8x128xf32>
    tpu.vector_store %arg3[%c0_7, %c0_8], %37 {strides = array<i32>} : memref<8x128xf32, #tpu.memory_space<vmem>>, vector<8x128xf32>,
    return
  }
  func.func @transform_0(%arg0: i32) -> i32 {
    %c0_i32 = arith.constant 0 : i32
    %c0_i32_0 = arith.constant 0 : i32
    return %c0_i32 : i32
  }
  func.func @transform_1(%arg0: i32) -> (i32, i32, i32) {
    %c0_i32 = arith.constant 0 : i32
    %c0_i32_0 = arith.constant 0 : i32
    %c0_i32_1 = arith.constant 0 : i32
    return %c0_i32, %arg0, %c0_i32_0 : i32, i32, i32
  }
  func.func @transform_2(%arg0: i32) -> (i32, i32) {
    %c0_i32 = arith.constant 0 : i32
    %c0_i32_0 = arith.constant 0 : i32
    return %arg0, %c0_i32 : i32, i32
  }
}

</mosaic_0001>

<llo_original>
// kernel: simple_nn_forward.1
$region0: #{simple_nn_forward.1}
  #allocation0 [shape = 'u32[]', space=smem, size = 0x4, offset = 0x4, fixed_abs, tag = 'smem constant byte address 0x4 - core index']
  #allocation1 [shape = 'u32[72,128]{1,0:T(1,128)}', space=vmem, size = 0x9000, scoped, tag = 'internal scratch']
  %s0 = inlined_call_operand.vmem [shape: f32[9], index: 0, kind: input, shape index: {}]
  %s1 = inlined_call_operand.vmem [shape: f32[2,8,128], index: 1, kind: input, shape index: {}]
  %s2 = inlined_call_operand.vmem [shape: f32[8,128], index: 2, kind: output, shape index: {}]
  %s3 = sld [smem:[#allocation0]]
  $region22: #{simple_nn_forward.1} parent=0
    _
  %s5 = ssub.s32 1, %s3
  %s6 = scalar_select 0, %s5, %s3
  $region1: #{simple_nn_forward.1} parent=0
    #allocation2 [shape = 'u8[512]{0}', space=smem, size = 0x200, scoped, tag = 'input window, operand 0, single buffered']
    #allocation3 [shape = 's32[1]{0}', space=sflag, size = 0x4, scoped, tag = 'scoped memory for simple_nn_forward.1']
    %7 = vsyncpa [#allocation3], 0
    // Predicated region
    $region2: #{simple_nn_forward.1} parent=1 // pred_check
      _
    $region3: #{simple_nn_forward.1} parent=1 // pred_check_branch
      %9 = sbr.rel (0) target = $region5
    $region4: #{simple_nn_forward.1} parent=1 // pred_region
      %11 = vsyncadd [#allocation3], 0
      %s13 = sshll.u32 %s0, 4
      %s14 = int_to_ptr.vmem [resolvable:$true] %s13
      %16 = dma.vmem_to_smem %s14, 16, [#allocation2], [#allocation3]
    $region5: #{simple_nn_forward.1} parent=1 // pred_fallthru
      _
    // Predicated region
    $region6: #{simple_nn_forward.1} parent=1 // pred_check
      _
    $region7: #{simple_nn_forward.1} parent=1 // pred_check_branch
      %18 = sbr.rel (0) target = $region9
    $region8: #{simple_nn_forward.1} parent=1 // pred_region
      _
    $region9: #{simple_nn_forward.1} parent=1 // pred_fallthru
      _
    // Predicated region
    $region10: #{simple_nn_forward.1} parent=1 // pred_check
      _
    $region11: #{simple_nn_forward.1} parent=1 // pred_check_branch
      %20 = sbr.rel (0) target = $region13
    $region12: #{simple_nn_forward.1} parent=1 // pred_region
      %22 = dma.done [#allocation3], 16
    $region13: #{simple_nn_forward.1} parent=1 // pred_fallthru
      _
    %23 = sfence
    %v24 = vld [vmem:[%s1] sm:$0xff]
    %s25 = scalar_lea.vmem %s1, 8
    %v26 = vld [vmem:[%s25] sm:$0xff]
    %s27 = sld [smem:[#allocation2]]
    %s28 = sld [smem:[#allocation2 + $0x1]]
    %s29 = sld [smem:[#allocation2 + $0x2]]
    %s30 = sld [smem:[#allocation2 + $0x3]]
    %s31 = sld [smem:[#allocation2 + $0x4]]
    %s32 = sld [smem:[#allocation2 + $0x5]]
    %s33 = sld [smem:[#allocation2 + $0x6]]
    %s34 = sld [smem:[#allocation2 + $0x7]]
    %s35 = sld [smem:[#allocation2 + $0x8]]
    %v36 = vstv %s27
    %v37 = vmul.f32 %v36, %v24
    %v38 = vstv %s28
    %v39 = vmul.f32 %v38, %v26
    %v40 = vadd.f32 %v37, %v39
    %v41 = vstv %s31
    %v42 = vadd.f32 %v40, %v41
    %v43 = vmax.f32 %v42, 0.0
    %v44 = vstv %s29
    %v45 = vmul.f32 %v44, %v24
    %v46 = vstv %s30
    %v47 = vmul.f32 %v46, %v26
    %v48 = vadd.f32 %v45, %v47
    %v49 = vstv %s32
    %v50 = vadd.f32 %v48, %v49
    %v51 = vmax.f32 %v50, 0.0
    %v52 = vstv %s33
    %v53 = vmul.f32 %v52, %v43
    %v54 = vstv %s34
    %v55 = vmul.f32 %v54, %v51
    %v56 = vadd.f32 %v53, %v55
    %v57 = vstv %s35
    %v58 = vadd.f32 %v56, %v57
    %59 = vst [vmem:[%s2] sm:$0xff] %v58
    // Predicated region
    $region14: #{simple_nn_forward.1} parent=1 // pred_check
      _
    $region15: #{simple_nn_forward.1} parent=1 // pred_check_branch
      %61 = sbr.rel (0) target = $region17
    $region16: #{simple_nn_forward.1} parent=1 // pred_region
      _
    $region17: #{simple_nn_forward.1} parent=1 // pred_fallthru
      _
    // Predicated region
    $region18: #{simple_nn_forward.1} parent=1 // pred_check
      _
    $region19: #{simple_nn_forward.1} parent=1 // pred_check_branch
      %63 = sbr.rel (0) target = $region21
    $region20: #{simple_nn_forward.1} parent=1 // pred_region
      _
    $region21: #{simple_nn_forward.1} parent=1 // pred_fallthru
      _
    %64 = vsyncpa [#allocation3], 1

</llo_original>
